<compile_context>
chip_gen: v7x
topology: tpu7x:2x2x1
jax: 0.10.0
libtpu: 0.0.40
codegen_flags: <defaults>
</compile_context>

<pallas_src>
import jax
import jax.numpy as jnp
from jax.experimental import pallas as pl
from jax.experimental.pallas import tpu as pltpu

VOCABULARY_SIZE = 256
EMBEDDING_DIM = 128


def _round_up(n, m):
    return ((n + m - 1) // m) * m


def embedding_gather_kernel(ids_ref, table_hbm, out_ref, row_buf, sems):
    # ids_ref   : (N_pad,) int32 in SMEM (scalar prefetch)
    # table_hbm : (V, D) float32 ref left in HBM (memory_space=pl.ANY)
    # out_ref   : (TILE_N, D) float32 output block in VMEM
    # row_buf   : (TILE_N, D) float32 VMEM scratch (DMA destination)
    # sems      : (TILE_N,) DMA semaphores
    tile_n = out_ref.shape[0]
    base = pl.program_id(0) * tile_n

    # Issue one HBM->VMEM row-gather DMA per token in this tile; all stay in
    # flight so the small row transfers overlap each other.
    @pl.loop(0, tile_n)
    def _start(r):
        token = ids_ref[base + r]
        pltpu.make_async_copy(
            table_hbm.at[token], row_buf.at[r], sems.at[r]
        ).start()

    # Wait for all rows of this tile.
    @pl.loop(0, tile_n)
    def _wait(r):
        pltpu.make_async_copy(
            table_hbm.at[0], row_buf.at[r], sems.at[r]
        ).wait()

    # Lane-dense, (8,128)-aligned block store; output writeback is pipelined
    # across grid steps by the out BlockSpec.
    out_ref[...] = row_buf[...]


def token_embeddings(x, emb_table, *, tile_n=128):
    """x: (B, S) integer token ids; emb_table: (V, D). Returns (B, S, D)."""
    B, S = x.shape
    V, D = emb_table.shape
    N = B * S

    # Flatten ids; clamp so out-of-range ids can never trigger an OOB DMA.
    # TODO(synk): PyTorch nn.Embedding raises on out-of-range ids; here they
    # are clamped to the valid range instead.
    ids = jnp.clip(x.reshape(N).astype(jnp.int32), 0, V - 1)

    # Token tile: multiple of 8 sublanes, no larger than (padded) N.
    tile_n = _round_up(min(tile_n, N), 8)
    n_pad = pl.cdiv(N, tile_n) * tile_n
    if n_pad != N:
        ids = jnp.pad(ids, (0, n_pad - N))  # padded slots gather row 0, sliced off

    grid = (n_pad // tile_n,)

    out = pl.pallas_call(
        embedding_gather_kernel,
        out_shape=jax.ShapeDtypeStruct((n_pad, D), emb_table.dtype),
        grid_spec=pltpu.PrefetchScalarGridSpec(
            num_scalar_prefetch=1,          # token ids -> SMEM
            grid=grid,
            in_specs=[
                pl.BlockSpec(memory_space=pl.ANY),   # table stays in HBM
            ],
            out_specs=pl.BlockSpec((tile_n, D), lambda i, ids: (i, 0)),
            scratch_shapes=[
                pltpu.VMEM((tile_n, D), emb_table.dtype),
                pltpu.SemaphoreType.DMA((tile_n,)),
            ],
        ),
        compiler_params=pltpu.CompilerParams(
            dimension_semantics=("parallel",),   # token tiles are independent
        ),
    )(ids, emb_table)

    return out[:N].reshape(B, S, D)


if __name__ == "__main__":
    key = jax.random.PRNGKey(0)
    k_emb, k_ids = jax.random.split(key)

    # Deterministic parameter init (nn.Embedding weight ~ N(0, 1); scaled here).
    emb_table = (
        jax.random.normal(k_emb, (VOCABULARY_SIZE, EMBEDDING_DIM), jnp.float32) * 0.02
    )

    # Small token-id batch: batch=2, seq=8 -> 16 tokens, 2 grid tiles of 8.
    x = jax.random.randint(k_ids, (2, 8), 0, VOCABULARY_SIZE, dtype=jnp.int32)

    y = token_embeddings(x, emb_table, tile_n=8)
    y = jax.block_until_ready(y)

    # Reference: plain gather (nn.Embedding semantics).
    y_ref = jnp.take(emb_table, x, axis=0)
    assert y.shape == (2, 8, EMBEDDING_DIM)
    assert jnp.allclose(y, y_ref, atol=1e-6), "mismatch vs reference gather"

    print("KERNEL_OK")
</pallas_src>

<mosaic_0001>
module attributes {stable_mosaic.version = 11 : i64} {
  func.func @embedding_gather_kernel(%arg0: i32, %arg1: memref<16xi32, #tpu.memory_space<smem>>, %arg2: memref<256x128xf32, #tpu.memory_space<any>>, %arg3: memref<8x128xf32, #tpu.memory_space<vmem>>, %arg4: memref<8x128xf32, #tpu.memory_space<vmem>>, %arg5: memref<8x!tpu.dma_semaphore, #tpu.memory_space<semaphore_mem>>) attributes {dimension_semantics = [#tpu.dimension_semantics<parallel>], iteration_bounds = array<i64: 2>, scalar_prefetch = 1 : i64, scratch_operands = 2 : i64, tpu.core_type = #tpu.core_type<tc>, window_params = [{}, {transform_indices = @transform_1, window_bounds = array<i64: 8, 128>}]} {
    %c8_i32 = arith.constant 8 : i32
    %0 = arith.muli %arg0, %c8_i32 : i32
    %c0_i32 = arith.constant 0 : i32
    %c8_i32_0 = arith.constant 8 : i32
    %1 = arith.addi %c0_i32, %c8_i32_0 : i32
    %c1_i32 = arith.constant 1 : i32
    scf.for %arg6 = %c0_i32 to %1 step %c1_i32  : i32 {
      %c1_i32_9 = arith.constant 1 : i32
      %5 = arith.muli %arg6, %c1_i32_9 : i32
      %c0_i32_10 = arith.constant 0 : i32
      %6 = arith.addi %c0_i32_10, %5 : i32
      %7 = arith.addi %0, %6 : i32
      %8 = arith.index_cast %7 : i32 to index
      %9 = memref.load %arg1[%8] : memref<16xi32, #tpu.memory_space<smem>>
      %c0_i32_11 = arith.constant 0 : i32
      %10 = tpu.memref_slice %arg2[%9, %c0_i32_11] : memref<256x128xf32, #tpu.memory_space<any>> -> memref<1x128xf32, #tpu.memory_space<any>>
      %11 = tpu.memref_squeeze %10 : memref<1x128xf32, #tpu.memory_space<any>> -> memref<128xf32, #tpu.memory_space<any>>
      %c0_i32_12 = arith.constant 0 : i32
      %12 = tpu.memref_slice %arg4[%6, %c0_i32_12] : memref<8x128xf32, #tpu.memory_space<vmem>> -> memref<1x128xf32, #tpu.memory_space<vmem>>
      %13 = tpu.memref_squeeze %12 : memref<1x128xf32, #tpu.memory_space<vmem>> -> memref<128xf32, #tpu.memory_space<vmem>>
      %14 = tpu.memref_slice %arg5[%6] : memref<8x!tpu.dma_semaphore, #tpu.memory_space<semaphore_mem>> -> memref<1x!tpu.dma_semaphore, #tpu.memory_space<semaphore_mem>>
      %15 = tpu.memref_squeeze %14 : memref<1x!tpu.dma_semaphore, #tpu.memory_space<semaphore_mem>> -> memref<!tpu.dma_semaphore, #tpu.memory_space<semaphore_mem>>
      tpu.enqueue_dma source(%11 : memref<128xf32, #tpu.memory_space<any>>) target(%13 : memref<128xf32, #tpu.memory_space<vmem>>) target_semaphore(%15 : memref<!tpu.dma_semaphore, #tpu.memory_space<semaphore_mem>>)
    }
    %c8_i32_1 = arith.constant 8 : i32
    %c0_i32_2 = arith.constant 0 : i32
    %c8_i32_3 = arith.constant 8 : i32
    %2 = arith.addi %c0_i32_2, %c8_i32_3 : i32
    %c1_i32_4 = arith.constant 1 : i32
    scf.for %arg6 = %c0_i32_2 to %2 step %c1_i32_4  : i32 {
      %c1_i32_9 = arith.constant 1 : i32
      %5 = arith.muli %arg6, %c1_i32_9 : i32
      %c0_i32_10 = arith.constant 0 : i32
      %6 = arith.addi %c0_i32_10, %5 : i32
      %c0_i32_11 = arith.constant 0 : i32
      %c0_i32_12 = arith.constant 0 : i32
      %7 = tpu.memref_slice %arg2[%c0_i32_11, %c0_i32_12] : memref<256x128xf32, #tpu.memory_space<any>> -> memref<1x128xf32, #tpu.memory_space<any>>
      %8 = tpu.memref_squeeze %7 : memref<1x128xf32, #tpu.memory_space<any>> -> memref<128xf32, #tpu.memory_space<any>>
      %c0_i32_13 = arith.constant 0 : i32
      %9 = tpu.memref_slice %arg4[%6, %c0_i32_13] : memref<8x128xf32, #tpu.memory_space<vmem>> -> memref<1x128xf32, #tpu.memory_space<vmem>>
      %10 = tpu.memref_squeeze %9 : memref<1x128xf32, #tpu.memory_space<vmem>> -> memref<128xf32, #tpu.memory_space<vmem>>
      %11 = tpu.memref_slice %arg5[%6] : memref<8x!tpu.dma_semaphore, #tpu.memory_space<semaphore_mem>> -> memref<1x!tpu.dma_semaphore, #tpu.memory_space<semaphore_mem>>
      %12 = tpu.memref_squeeze %11 : memref<1x!tpu.dma_semaphore, #tpu.memory_space<semaphore_mem>> -> memref<!tpu.dma_semaphore, #tpu.memory_space<semaphore_mem>>
      tpu.wait_dma2 semaphore(%12 : memref<!tpu.dma_semaphore, #tpu.memory_space<semaphore_mem>>) src(%8 : memref<128xf32, #tpu.memory_space<any>>) dst(%10 : memref<128xf32, #tpu.memory_space<vmem>>)
    }
    %c8_i32_5 = arith.constant 8 : i32
    %c0 = arith.constant 0 : index
    %c0_6 = arith.constant 0 : index
    %3 = vector.load %arg4[%c0, %c0_6] : memref<8x128xf32, #tpu.memory_space<vmem>>, vector<8x128xf32>
    %c0_7 = arith.constant 0 : index
    %c0_8 = arith.constant 0 : index
    %4 = vector.load %arg3[%c0_7, %c0_8] : memref<8x128xf32, #tpu.memory_space<vmem>>, vector<8x128xf32>
    tpu.vector_store %arg3[%c0_7, %c0_8], %3 {strides = array<i32>} : memref<8x128xf32, #tpu.memory_space<vmem>>, vector<8x128xf32>,
    return
  }
  func.func @transform_1(%arg0: i32, %arg1: memref<16xi32, #tpu.memory_space<smem>>) -> (i32, i32) {
    %c0_i32 = arith.constant 0 : i32
    %c0_i32_0 = arith.constant 0 : i32
    return %arg0, %c0_i32 : i32, i32
  }
}

</mosaic_0001>

<llo_original>
// kernel: tpu_custom_call.1
$region0: #{tpu_custom_call.1}
  #allocation0 [shape = 'u32[]', space=smem, size = 0x4, offset = 0x4, fixed_abs, tag = 'smem constant byte address 0x4 - core index']
  #allocation1 [shape = 'u32[144,128]{1,0:T(1,128)}', space=vmem, size = 0x12000, scoped, tag = 'internal scratch']
  #allocation2 [shape = 'f32[8,128]{1,0:T(8,128)}', space=vmem, size = 0x1000, scoped, tag = 'scratch operand']
  #allocation3 [shape = 's32[8]{0}', space=sflag, size = 0x20, scoped, tag = 'scratch operand']
  #allocation4 [shape = 's32[1]{0}', space=sflag, size = 0x4, scoped, tag = 'scoped memory for tpu_custom_call.1']
  #allocation5 [shape = 'u8[512]{0}', space=smem, size = 0x200, scoped, tag = 'prefetched SMEM operand 0']
  #allocation8 [shape = 's32[]', space=sflag, size = 0x4, offset = 0, fixed_abs, tag = 'sflag constant byte address 0x0 - dummy sync flag']
  #allocation9 [shape = 's32[]', space=sflag, size = 0x4, offset = 0, fixed_abs, tag = 'sflag constant byte address 0x0 - dummy sync flag']
  #allocation10 [shape = 'u32[]', space=smem, size = 0x4, offset = 0x44, fixed_abs, tag = 'smem constant byte address 0x44 - assertion arg 0']
  #allocation11 [shape = 'u32[]', space=smem, size = 0x4, offset = 0x48, fixed_abs, tag = 'smem constant byte address 0x48 - assertion arg 1']
  %s0 = inlined_call_operand.hbm [shape: s32[16], index: 0, kind: input, shape index: {}]
  %s1 = inlined_call_operand.hbm [shape: f32[256,128], index: 1, kind: input, shape index: {}]
  %s2 = inlined_call_operand.hbm [shape: f32[16,128], index: 2, kind: output, shape index: {}]
  %s3 = sld [smem:[#allocation0]]
  $region43: #{tpu_custom_call.1} parent=0
    _
  %s5 = ssub.s32 1, %s3
  %s6 = scalar_select 0, %s5, %s3
  %8 = dma.hbm_to_smem %s0, 16, [#allocation5], [#allocation4]
  %9 = dma.done [#allocation4], 16
  %10 = sfence
  $region1: #{tpu_custom_call.1} parent=0
    #allocation6 [shape = 'u8[8192]{0}', space=vmem, size = 0x2000, scoped, tag = 'output window, operand 0']
    #allocation7 [shape = 's32[2]{0}', space=sflag, size = 0x8, scoped, tag = 'scoped memory for tpu_custom_call.1']
    %11 = vsyncpa [#allocation7], 0
    %s12 = scalar_lea.sflag [#allocation7], 1
    %13 = vsyncpa %s12, 0
    loop: start=0, step=1, limit=3
    $region2: #{tpu_custom_call.1} parent=1 // loop_pre_header
      _
    $region3: #{tpu_custom_call.1} parent=1 // loop_header
      %s15 = sphi 0, %s19
      %p16 = scmp.ge.s32.totalorder %s15, 3
      %s24 = sphi 0, %s26
      %s27 = sphi 0, %s24
      %s37 = sphi 0, %s27
    $region4: #{tpu_custom_call.1} parent=1 // loop_header_branch
      %18 = sbr.rel (%p16) target = $region8
    $region5: #{tpu_custom_call.1} parent=1 // loop_body
      %s20 = ssub.s32 %s15, 1
      %s21 = sadd.s32 %s15, 1
      %s22 = ssub.s32 %s15, %s21
      %p23 = scmp.eq.s32.totalorder %s22, 0
      %s25 = sadd.s32 %s24, 1
      %s26 = scalar_select %p23, %s24, %s25
      %p28 = pneg %p23
      %p29 = scmp.eq.s32.totalorder %s15, 1
      %p30 = por %p28, %p29
      %p31 = scmp.ne.s32.totalorder %s24, %s27
      %p32 = scmp.eq.s32.totalorder %s15, 0
      %p33 = por %p31, %p32
      %p34 = scmp.ne.s32.totalorder %s24, %s27
      %p35 = scmp.eq.s32.totalorder %s20, 1
      %p36 = por %p34, %p35
      %p38 = scmp.ne.s32.totalorder %s27, %s37
      %p39 = scmp.eq.s32.totalorder %s20, 0
      %p40 = por %p38, %p39
      %p41 = scmp.lt.s32.totalorder %s15, 2
      // Predicated region
      $region9: #{tpu_custom_call.1} parent=5 // pred_check
        %p42 = pneg %p41
      $region10: #{tpu_custom_call.1} parent=5 // pred_check_branch
        %44 = sbr.rel (%p42) target = $region12
      $region11: #{tpu_custom_call.1} parent=5 // pred_region
        %p45 = pneg %p33
        %p46 = pneg %p30
        %s47 = sand.u32 %s24, 1
        %s48 = scalar_lea.sflag [#allocation7], %s47
        %s49 = sand.u32 %s24, 1
        %s50 = smul.addr %s49, 8
        %s51 = scalar_lea.vmem [#allocation6], %s50
        %s52 = smul.u32 %s15, 8
        loop: start=0, step=1, limit=8
        $region13: #{tpu_custom_call.1} parent=11 // loop_pre_header
          _
        $region14: #{tpu_custom_call.1} parent=11 // loop_header
          %s54 = sphi 0, %s58
          %p55 = scmp.ge.s32.totalorder %s54, 8
        $region15: #{tpu_custom_call.1} parent=11 // loop_header_branch
          %57 = sbr.rel (%p55) target = $region19
        $region16: #{tpu_custom_call.1} parent=11 // loop_body
          %s59 = sadd.s32 %s52, %s54
          %s60 = sld [smem:[#allocation5 + %s59]]
          %s61 = smul.addr %s60, 16
          %s62 = scalar_lea.hbm %s1, %s61
          %s63 = scalar_lea.vmem [#allocation2], %s54
          %s64 = scalar_lea.sflag [#allocation3], %s54
          // Predicated region
          $region20: #{tpu_custom_call.1} parent=16 // pred_check
            _
          $region21: #{tpu_custom_call.1} parent=16 // pred_check_branch
            %66 = sbr.rel target = $region23
          $region22: #{tpu_custom_call.1} parent=16 // pred_region
            %67 = sst [smem:[#allocation10]] [#allocation9]
            %68 = sst [smem:[#allocation11]] [#allocation8]
          $region23: #{tpu_custom_call.1} parent=16 // pred_fallthru
            _
          %70 = shalt.err (0)
          %s72 = sshll.u32 %s63, 4
          %s73 = int_to_ptr.vmem [resolvable:$true] %s72
          %75 = dma.hbm_to_vmem [thread:$0]  %s62, 16, %s73, %s64
        $region17: #{tpu_custom_call.1} parent=11 // loop_footer
          %s58 = sadd.s32 1, %s54
        $region18: #{tpu_custom_call.1} parent=11 // loop_footer_branch
          %53 = sbr.rel target = $region14
        $region19: #{tpu_custom_call.1} parent=11 // loop_exit
          _
        loop: start=0, step=1, limit=8
        $region24: #{tpu_custom_call.1} parent=11 // loop_pre_header
          _
        $region25: #{tpu_custom_call.1} parent=11 // loop_header
          %s77 = sphi 0, %s81
          %p78 = scmp.ge.s32.totalorder %s77, 8
        $region26: #{tpu_custom_call.1} parent=11 // loop_header_branch
          %80 = sbr.rel (%p78) target = $region30
        $region27: #{tpu_custom_call.1} parent=11 // loop_body
          %s82 = scalar_lea.sflag [#allocation3], %s77
          %84 = dma.done %s82, 16
        $region28: #{tpu_custom_call.1} parent=11 // loop_footer
          %s81 = sadd.s32 1, %s77
        $region29: #{tpu_custom_call.1} parent=11 // loop_footer_branch
          %76 = sbr.rel target = $region25
        $region30: #{tpu_custom_call.1} parent=11 // loop_exit
          _
        %v85 = vld [vmem:[#allocation2] sm:$0xff]
        %86 = vst [vmem:[%s51] sm:$0xff] %v85
        %s87 = sand.u32 %s24, 1
        %s88 = scalar_lea.sflag [#allocation7], %s87
        %s89 = sand.u32 %s24, 1
        %s90 = smul.addr %s89, 8
        %s91 = scalar_lea.vmem [#allocation6], %s90
        // Predicated region
        $region31: #{tpu_custom_call.1} parent=11 // pred_check
          %p92 = pneg %p30
        $region32: #{tpu_custom_call.1} parent=11 // pred_check_branch
          %94 = sbr.rel (%p92) target = $region34
        $region33: #{tpu_custom_call.1} parent=11 // pred_region
          %s96 = ssub.s32 128, 128
          %97 = vsyncadd %s88, %s96
          %s98 = smul.addr %s15, 128
          %s99 = scalar_lea.hbm %s2, %s98
          %s101 = sshll.u32 %s91, 4
          %s102 = int_to_ptr.vmem [resolvable:$true] %s101
          %104 = dma.vmem_to_hbm [thread:$0]  %s102, 128, %s99, %s88
        $region34: #{tpu_custom_call.1} parent=11 // pred_fallthru
          _
      $region12: #{tpu_custom_call.1} parent=5 // pred_fallthru
        _
      %p105 = scmp.le.s32.totalorder 1, %s15
      // Predicated region
      $region35: #{tpu_custom_call.1} parent=5 // pred_check
        %p106 = pneg %p105
      $region36: #{tpu_custom_call.1} parent=5 // pred_check_branch
        %108 = sbr.rel (%p106) target = $region38
      $region37: #{tpu_custom_call.1} parent=5 // pred_region
        %s109 = ssub.s32 %s15, 1
        // Predicated region
        $region39: #{tpu_custom_call.1} parent=37 // pred_check
          %p110 = pneg %p36
        $region40: #{tpu_custom_call.1} parent=37 // pred_check_branch
          %112 = sbr.rel (%p110) target = $region42
        $region41: #{tpu_custom_call.1} parent=37 // pred_region
          %s113 = sand.u32 %s27, 1
          %s114 = scalar_lea.sflag [#allocation7], %s113
          %s115 = sand.u32 %s27, 1
          %s116 = smul.addr %s115, 8
          %s117 = scalar_lea.vmem [#allocation6], %s116
          %118 = dma.done %s114, 128
        $region42: #{tpu_custom_call.1} parent=37 // pred_fallthru
          _
      $region38: #{tpu_custom_call.1} parent=5 // pred_fallthru
        _
    $region6: #{tpu_custom_call.1} parent=1 // loop_footer
      %s19 = sadd.s32 1, %s15
    $region7: #{tpu_custom_call.1} parent=1 // loop_footer_branch
      %14 = sbr.rel target = $region3
    $region8: #{tpu_custom_call.1} parent=1 // loop_exit
      _
    %119 = vsyncpa [#allocation7], 1
    %s120 = scalar_lea.sflag [#allocation7], 1
    %121 = vsyncpa %s120, 1
  %122 = vsyncmov [#allocation3]
  %s123 = vpop.sfrf %122
  %p124 = scmp.eq.s32.totalorder %s123, 0
  %p125 = pneg %p124
  %127 = shalt.err (%p125)
  %s128 = scalar_lea.sflag [#allocation3], 1
  %129 = vsyncmov %s128
  %s130 = vpop.sfrf %129
  %p131 = scmp.eq.s32.totalorder %s130, 0
  %p132 = pneg %p131
  %134 = shalt.err (%p132)
  %s135 = scalar_lea.sflag [#allocation3], 2
  %136 = vsyncmov %s135
  %s137 = vpop.sfrf %136
  %p138 = scmp.eq.s32.totalorder %s137, 0
  %p139 = pneg %p138
  %141 = shalt.err (%p139)
  %s142 = scalar_lea.sflag [#allocation3], 3
  %143 = vsyncmov %s142
  %s144 = vpop.sfrf %143
  %p145 = scmp.eq.s32.totalorder %s144, 0
  %p146 = pneg %p145
  %148 = shalt.err (%p146)
  %s149 = scalar_lea.sflag [#allocation3], 4
  %150 = vsyncmov %s149
  %s151 = vpop.sfrf %150
  %p152 = scmp.eq.s32.totalorder %s151, 0
  %p153 = pneg %p152
  %155 = shalt.err (%p153)
  %s156 = scalar_lea.sflag [#allocation3], 5
  %157 = vsyncmov %s156
  %s158 = vpop.sfrf %157
  %p159 = scmp.eq.s32.totalorder %s158, 0
  %p160 = pneg %p159
  %162 = shalt.err (%p160)
  %s163 = scalar_lea.sflag [#allocation3], 6
  %164 = vsyncmov %s163
  %s165 = vpop.sfrf %164
  %p166 = scmp.eq.s32.totalorder %s165, 0
  %p167 = pneg %p166
  %169 = shalt.err (%p167)
  %s170 = scalar_lea.sflag [#allocation3], 7
  %171 = vsyncmov %s170
  %s172 = vpop.sfrf %171
  %p173 = scmp.eq.s32.totalorder %s172, 0
  %p174 = pneg %p173
  %176 = shalt.err (%p174)

</llo_original>
